<compile_context>
chip_gen: v5e
topology: v5e:2x2
jax: 0.10.0
libtpu: 0.0.40
codegen_flags: <defaults>
</compile_context>

<pallas_src>
import jax
import jax.numpy as jnp
from jax.experimental import pallas as pl
from jax.experimental.pallas import tpu as pltpu


def _round_up(x, m):
    return ((x + m - 1) // m) * m


def _matmul_single_kernel(x_ref, w_ref, o_ref):
    # Whole K fits in one tile: one MXU pass per output block, no reduction loop.
    o_ref[...] = jnp.dot(
        x_ref[...], w_ref[...], preferred_element_type=jnp.float32
    ).astype(o_ref.dtype)


def _matmul_acc_kernel(x_ref, w_ref, o_ref):
    # Output block index is constant across the K grid axis, so the f32 output
    # block stays resident in VMEM -> accumulate directly into it (no scratch).
    @pl.when(pl.program_id(2) == 0)
    def _():
        o_ref[...] = jnp.zeros_like(o_ref)

    o_ref[...] += jnp.dot(
        x_ref[...], w_ref[...], preferred_element_type=jnp.float32
    )


# Conservative tile budget: double-buffered input tiles + resident f32 output
# must fit comfortably inside v7x's 64 MiB per-core VMEM (v5e/v6e have 128 MiB).
_TILE_BUDGET_BYTES = 40 * 1024 * 1024


def _select_tiles(M, N, K, itemsize):
    """Pick (tm, tn, tk): 8/128-aligned, as large as fits the VMEM budget."""
    n_row = -(-M // 256)                       # cap tm at 256
    tm = min(256, _round_up(-(-M // n_row), 8))
    n_col = -(-N // 512)                       # cap tn at 512
    tn = min(512, _round_up(-(-N // n_col), 128))
    k_full = _round_up(K, 128)

    def max_tk(tm_, tn_):
        avail = (_TILE_BUDGET_BYTES - 2 * tm_ * tn_ * 4) // (2 * itemsize)
        return max((avail // (tm_ + tn_)) // 128 * 128, 0)

    tk = min(k_full, max_tk(tm, tn))
    while tk < 128 and tn > 128:
        tn = _round_up(tn // 2, 128)
        tk = min(k_full, max_tk(tm, tn))
    while tk < 128 and tm > 8:
        tm = _round_up(tm // 2, 8)
        tk = min(k_full, max_tk(tm, tn))
    return tm, tn, max(tk, 128)


def embedding_matrix_forward(x, word_vec, *, compute_dtype=None,
                             tm=None, tn=None, tk=None):
    """Computes x @ word_vec (the EmbeddingMatrix forward) with a Pallas kernel.

    x:        (..., input_size)
    word_vec: (input_size, output_size)
    returns:  (..., output_size) float32
    """
    orig_shape = x.shape
    K = orig_shape[-1]
    K2, N = word_vec.shape
    assert K == K2, (K, K2)
    M = 1
    for d in orig_shape[:-1]:
        M *= d
    x2d = x.reshape(M, K)

    if compute_dtype is not None:
        x2d = x2d.astype(compute_dtype)
        word_vec = word_vec.astype(compute_dtype)
    itemsize = jnp.dtype(x2d.dtype).itemsize

    auto = tm is None and tn is None and tk is None
    if tm is None or tn is None or tk is None:
        stm, stn, stk = _select_tiles(M, N, K, itemsize)
        tm = tm if tm is not None else stm
        tn = tn if tn is not None else stn
        tk = tk if tk is not None else stk

    if auto:
        # v7x has 2 TensorCores: try to give the parallel grid >= 2 blocks.
        if (_round_up(M, tm) // tm) * (_round_up(N, tn) // tn) < 2:
            if tn >= 256:
                tn = _round_up(tn // 2, 128)
            elif tm >= 16:
                tm = _round_up(tm // 2, 8)

    # Pad to tile multiples (zero-padding the contraction dim is harmless).
    M_pad = _round_up(M, tm)
    N_pad = _round_up(N, tn)
    K_pad = _round_up(K, tk)
    if (M_pad, K_pad) != (M, K):
        x2d = jnp.pad(x2d, ((0, M_pad - M), (0, K_pad - K)))
    if (K_pad, N_pad) != (K, N):
        word_vec = jnp.pad(word_vec, ((0, K_pad - K), (0, N_pad - N)))

    nm, nn_, nk = M_pad // tm, N_pad // tn, K_pad // tk

    cost = pl.CostEstimate(
        flops=2 * M_pad * N_pad * K_pad,
        transcendentals=0,
        bytes_accessed=itemsize * (M_pad * K_pad + K_pad * N_pad)
        + 4 * M_pad * N_pad,
    )
    need = 2 * (tm * tk + tk * tn) * itemsize + 2 * tm * tn * 4
    vmem_limit = max(32 << 20, min(int(need * 1.5) + (4 << 20), 56 << 20))

    if nk == 1:
        grid = (nm, nn_)
        kernel = _matmul_single_kernel
        in_specs = [
            pl.BlockSpec((tm, K_pad), lambda i, j: (i, 0)),
            pl.BlockSpec((K_pad, tn), lambda i, j: (0, j)),
        ]
        out_specs = pl.BlockSpec((tm, tn), lambda i, j: (i, j))
        dims = ("parallel", "parallel")
    else:
        grid = (nm, nn_, nk)
        kernel = _matmul_acc_kernel
        in_specs = [
            pl.BlockSpec((tm, tk), lambda i, j, k: (i, k)),
            pl.BlockSpec((tk, tn), lambda i, j, k: (k, j)),
        ]
        out_specs = pl.BlockSpec((tm, tn), lambda i, j, k: (i, j))
        dims = ("parallel", "parallel", "arbitrary")

    out = pl.pallas_call(
        kernel,
        out_shape=jax.ShapeDtypeStruct((M_pad, N_pad), jnp.float32),
        grid_spec=pltpu.PrefetchScalarGridSpec(
            num_scalar_prefetch=0,
            grid=grid,
            in_specs=in_specs,
            out_specs=out_specs,
        ),
        compiler_params=pltpu.CompilerParams(
            dimension_semantics=dims,
            vmem_limit_bytes=vmem_limit,
        ),
        cost_estimate=cost,
    )(x2d, word_vec)

    out = out[:M, :N]
    return out.reshape(*orig_shape[:-1], N)


if __name__ == "__main__":
    # Small synthetic shapes: batch=2, seq=8, input_size (vocab) = 256,
    # output_size (embedding dim) = 128.
    batch, seq = 2, 8
    input_size, output_size = 256, 128

    key = jax.random.PRNGKey(0)
    k_x, k_w = jax.random.split(key)

    # Deterministic "pretrained" word vectors (word_vec in the module __init__).
    word_vec = jax.random.normal(k_w, (input_size, output_size), dtype=jnp.float32)
    # Input x: (batch, seq, input_size), dense features (nn.Linear input).
    x = jax.random.normal(k_x, (batch, seq, input_size), dtype=jnp.float32)

    # f32 path: exact nn.Linear(bias=False, weight=word_vec.T) semantics.
    out = embedding_matrix_forward(x, word_vec)
    jax.block_until_ready(out)

    ref = x @ word_vec
    assert out.shape == (batch, seq, output_size)
    assert jnp.allclose(out, ref, atol=1e-4, rtol=1e-4)

    # bf16 operands with f32 accumulation (optional fast path) — loose tolerance.
    out_bf16 = embedding_matrix_forward(x, word_vec, compute_dtype=jnp.bfloat16)
    jax.block_until_ready(out_bf16)
    assert out_bf16.shape == (batch, seq, output_size)
    assert jnp.allclose(out_bf16, ref, atol=0.5, rtol=5e-2)

    print("KERNEL_OK")
</pallas_src>

<mosaic_0001>
module attributes {stable_mosaic.version = 11 : i64} {
  func.func @_matmul_single_kernel(%arg0: i32, %arg1: i32, %arg2: memref<8x256xf32, #tpu.memory_space<vmem>>, %arg3: memref<256x128xf32, #tpu.memory_space<vmem>>, %arg4: memref<8x128xf32, #tpu.memory_space<vmem>>) attributes {dimension_semantics = [#tpu.dimension_semantics<parallel>, #tpu.dimension_semantics<parallel>], iteration_bounds = array<i64: 2, 1>, scalar_prefetch = 0 : i64, scratch_operands = 0 : i64, tpu.core_type = #tpu.core_type<tc>, window_params = [{transform_indices = @transform_0, window_bounds = array<i64: 8, 256>}, {transform_indices = @transform_1, window_bounds = array<i64: 256, 128>}, {transform_indices = @transform_2, window_bounds = array<i64: 8, 128>}]} {
    %c0 = arith.constant 0 : index
    %c0_0 = arith.constant 0 : index
    %0 = vector.load %arg2[%c0, %c0_0] : memref<8x256xf32, #tpu.memory_space<vmem>>, vector<8x256xf32>
    %c0_1 = arith.constant 0 : index
    %c0_2 = arith.constant 0 : index
    %1 = vector.load %arg3[%c0_1, %c0_2] : memref<256x128xf32, #tpu.memory_space<vmem>>, vector<256x128xf32>
    %cst = arith.constant dense<0.000000e+00> : vector<8x128xf32>
    %2 = tpu.matmul %0, %1, %cst {dimension_numbers = #tpu.dot_dimension_numbers<[1], [0], [0], [1], [0, 0, 1, 1], [], []>} : vector<8x256xf32>, vector<256x128xf32>, vector<8x128xf32> -> vector<8x128xf32>
    %c0_3 = arith.constant 0 : index
    %c0_4 = arith.constant 0 : index
    %3 = vector.load %arg4[%c0_3, %c0_4] : memref<8x128xf32, #tpu.memory_space<vmem>>, vector<8x128xf32>
    tpu.vector_store %arg4[%c0_3, %c0_4], %2 {strides = array<i32>} : memref<8x128xf32, #tpu.memory_space<vmem>>, vector<8x128xf32>,
    return
  }
  func.func @transform_0(%arg0: i32, %arg1: i32) -> (i32, i32) {
    %c0_i32 = arith.constant 0 : i32
    %c0_i32_0 = arith.constant 0 : i32
    return %arg0, %c0_i32 : i32, i32
  }
  func.func @transform_1(%arg0: i32, %arg1: i32) -> (i32, i32) {
    %c0_i32 = arith.constant 0 : i32
    %c0_i32_0 = arith.constant 0 : i32
    return %c0_i32, %arg1 : i32, i32
  }
  func.func @transform_2(%arg0: i32, %arg1: i32) -> (i32, i32) {
    %c0_i32 = arith.constant 0 : i32
    return %arg0, %arg1 : i32, i32
  }
}

</mosaic_0001>

<llo_original>
// kernel: tpu_custom_call.1
$region0: #{tpu_custom_call.1}
  #allocation0 [shape = 'u32[]', space=smem, size = 0x4, offset = 0x4, fixed_abs, tag = 'smem constant byte address 0x4 - core index']
  #allocation1 [shape = 'u32[72,128]{1,0:T(1,128)}', space=vmem, size = 0x9000, scoped, tag = 'internal scratch']
  %s0 = inlined_call_operand.hbm [shape: f32[16,256], index: 0, kind: input, shape index: {}]
  %s1 = inlined_call_operand.hbm [shape: f32[256,128], index: 1, kind: input, shape index: {}]
  %s2 = inlined_call_operand.hbm [shape: f32[16,128], index: 2, kind: output, shape index: {}]
  %s3 = sld [smem:[#allocation0]]
  $region49: #{tpu_custom_call.1} parent=0
    _
  %s5 = ssub.s32 1, %s3
  %s6 = scalar_select 0, %s5, %s3
  $region1: #{tpu_custom_call.1} parent=0
    #allocation2 [shape = 'u8[16384]{0}', space=vmem, size = 0x4000, scoped, tag = 'input window, operand 0']
    #allocation3 [shape = 's32[2]{0}', space=sflag, size = 0x8, scoped, tag = 'scoped memory for tpu_custom_call.1']
    #allocation4 [shape = 's32[2]{0}', space=sflag, size = 0x8, scoped, tag = 'scoped memory for tpu_custom_call.1']
    #allocation5 [shape = 'u8[131072]{0}', space=vmem, size = 0x20000, scoped, tag = 'input window, operand 1, single buffered']
    #allocation6 [shape = 's32[1]{0}', space=sflag, size = 0x4, scoped, tag = 'scoped memory for tpu_custom_call.1']
    #allocation7 [shape = 'u8[8192]{0}', space=vmem, size = 0x2000, scoped, tag = 'output window, operand 0']
    %7 = vsyncpa [#allocation3], 0
    %s8 = scalar_lea.sflag [#allocation3], 1
    %9 = vsyncpa %s8, 0
    %10 = vsyncpa [#allocation6], 0
    %11 = vsyncpa [#allocation4], 0
    %s12 = scalar_lea.sflag [#allocation4], 1
    %13 = vsyncpa %s12, 0
    loop: start=0, step=1, limit=4
    $region2: #{tpu_custom_call.1} parent=1 // loop_pre_header
      _
    $region3: #{tpu_custom_call.1} parent=1 // loop_header
      %s15 = sphi 0, %s19
      %p16 = scmp.ge.s32.totalorder %s15, 4
      %s22 = sphi 0, %s34
      %s23 = sphi 0, %s30
      %s24 = sphi 0, %s22
      %s25 = sphi 0, %s23
      %s26 = sphi 0, %s24
      %s27 = sphi 0, %s25
      %s37 = sphi 0, %s39
      %s40 = sphi 0, %s37
      %s41 = sphi 0, %s40
      %s57 = sphi 0, %s41
      %s63 = sphi 0, %s65
      %s66 = sphi 0, %s63
      %s67 = sphi 0, %s66
      %s83 = sphi 0, %s67
      %s91 = sphi 0, %s93
      %s94 = sphi 0, %s91
      %s95 = sphi 0, %s94
      %s111 = sphi 0, %s95
    $region4: #{tpu_custom_call.1} parent=1 // loop_header_branch
      %18 = sbr.rel (%p16) target = $region8
    $region5: #{tpu_custom_call.1} parent=1 // loop_body
      %s20 = ssub.s32 %s15, 1
      %s21 = ssub.s32 %s15, 2
      %s28 = sadd.s32 1, %s23
      %p29 = scmp.ge.s32.totalorder %s28, 1
      %s30 = scalar_select %p29, 0, %s28
      %s31 = sadd.s32 1, %s22
      %s32 = scalar_select %p29, %s31, %s22
      %p33 = scmp.ge.s32.totalorder %s32, 2
      %s34 = scalar_select %p33, 0, %s32
      %s35 = ssub.s32 %s22, %s34
      %p36 = scmp.eq.s32.totalorder %s35, 0
      %s38 = sadd.s32 %s37, 1
      %s39 = scalar_select %p36, %s37, %s38
      %p42 = pneg %p36
      %p43 = scmp.eq.s32.totalorder %s15, 1
      %p44 = por %p42, %p43
      %p45 = scmp.ne.s32.totalorder %s37, %s40
      %p46 = scmp.eq.s32.totalorder %s15, 0
      %p47 = por %p45, %p46
      %p48 = scmp.ne.s32.totalorder %s37, %s40
      %p49 = scmp.eq.s32.totalorder %s20, 1
      %p50 = por %p48, %p49
      %p51 = scmp.ne.s32.totalorder %s40, %s41
      %p52 = scmp.eq.s32.totalorder %s20, 0
      %p53 = por %p51, %p52
      %p54 = scmp.ne.s32.totalorder %s40, %s41
      %p55 = scmp.eq.s32.totalorder %s21, 1
      %p56 = por %p54, %p55
      %p58 = scmp.ne.s32.totalorder %s41, %s57
      %p59 = scmp.eq.s32.totalorder %s21, 0
      %p60 = por %p58, %p59
      %s61 = ssub.s32 %s23, %s30
      %p62 = scmp.eq.s32.totalorder %s61, 0
      %s64 = sadd.s32 %s63, 1
      %s65 = scalar_select %p62, %s63, %s64
      %p68 = pneg %p62
      %p69 = scmp.eq.s32.totalorder %s15, 1
      %p70 = por %p68, %p69
      %p71 = scmp.ne.s32.totalorder %s63, %s66
      %p72 = scmp.eq.s32.totalorder %s15, 0
      %p73 = por %p71, %p72
      %p74 = scmp.ne.s32.totalorder %s63, %s66
      %p75 = scmp.eq.s32.totalorder %s20, 1
      %p76 = por %p74, %p75
      %p77 = scmp.ne.s32.totalorder %s66, %s67
      %p78 = scmp.eq.s32.totalorder %s20, 0
      %p79 = por %p77, %p78
      %p80 = scmp.ne.s32.totalorder %s66, %s67
      %p81 = scmp.eq.s32.totalorder %s21, 1
      %p82 = por %p80, %p81
      %p84 = scmp.ne.s32.totalorder %s67, %s83
      %p85 = scmp.eq.s32.totalorder %s21, 0
      %p86 = por %p84, %p85
      %s87 = ssub.s32 %s22, %s34
      %s88 = ssub.s32 %s23, %s30
      %s89 = sor.u32 %s87, %s88
      %p90 = scmp.eq.s32.totalorder %s89, 0
      %s92 = sadd.s32 %s91, 1
      %s93 = scalar_select %p90, %s91, %s92
      %p96 = pneg %p90
      %p97 = scmp.eq.s32.totalorder %s15, 1
      %p98 = por %p96, %p97
      %p99 = scmp.ne.s32.totalorder %s91, %s94
      %p100 = scmp.eq.s32.totalorder %s15, 0
      %p101 = por %p99, %p100
      %p102 = scmp.ne.s32.totalorder %s91, %s94
      %p103 = scmp.eq.s32.totalorder %s20, 1
      %p104 = por %p102, %p103
      %p105 = scmp.ne.s32.totalorder %s94, %s95
      %p106 = scmp.eq.s32.totalorder %s20, 0
      %p107 = por %p105, %p106
      %p108 = scmp.ne.s32.totalorder %s94, %s95
      %p109 = scmp.eq.s32.totalorder %s21, 1
      %p110 = por %p108, %p109
      %p112 = scmp.ne.s32.totalorder %s95, %s111
      %p113 = scmp.eq.s32.totalorder %s21, 0
      %p114 = por %p112, %p113
      %p115 = scmp.le.s32.totalorder 1, %s15
      %p116 = scmp.lt.s32.totalorder %s15, 3
      %p117 = pnand %p115, %p116
      %p118 = pneg %p117
      // Predicated region
      $region9: #{tpu_custom_call.1} parent=5 // pred_check
        _
      $region10: #{tpu_custom_call.1} parent=5 // pred_check_branch
        %120 = sbr.rel (%p117) target = $region12
      $region11: #{tpu_custom_call.1} parent=5 // pred_region
        %s121 = ssub.s32 %s15, 1
        // Predicated region
        $region13: #{tpu_custom_call.1} parent=11 // pred_check
          %p122 = pneg %p79
        $region14: #{tpu_custom_call.1} parent=11 // pred_check_branch
          %124 = sbr.rel (%p122) target = $region16
        $region15: #{tpu_custom_call.1} parent=11 // pred_region
          %126 = vsyncadd [#allocation6], 0
          %s127 = smul.addr %s25, 8
          %s128 = scalar_lea.hbm %s1, %s127
          %s129 = sshll.u32 %s128, 4
          %s130 = int_to_ptr.hbm [resolvable:$true] %s129
          %s131 = sshll.u32 [#allocation5], 4
          %s132 = int_to_ptr.vmem [resolvable:$true] %s131
          %137 = dma.hbm_to_vmem [thread:$0]  %s130, 4096, %s132, [#allocation6], 128, 128, 8
        $region16: #{tpu_custom_call.1} parent=11 // pred_fallthru
          _
      $region12: #{tpu_custom_call.1} parent=5 // pred_fallthru
        _
      %p138 = scmp.lt.s32.totalorder %s15, 2
      // Predicated region
      $region17: #{tpu_custom_call.1} parent=5 // pred_check
        %p139 = pneg %p138
      $region18: #{tpu_custom_call.1} parent=5 // pred_check_branch
        %141 = sbr.rel (%p139) target = $region20
      $region19: #{tpu_custom_call.1} parent=5 // pred_region
        // Predicated region
        $region21: #{tpu_custom_call.1} parent=19 // pred_check
          %p142 = pneg %p47
        $region22: #{tpu_custom_call.1} parent=19 // pred_check_branch
          %144 = sbr.rel (%p142) target = $region24
        $region23: #{tpu_custom_call.1} parent=19 // pred_region
          %s145 = sand.u32 %s37, 1
          %s146 = scalar_lea.sflag [#allocation3], %s145
          %s147 = sand.u32 %s37, 1
          %s148 = smul.addr %s147, 16
          %s149 = scalar_lea.vmem [#allocation2], %s148
          %151 = vsyncadd %s146, 0
          %s152 = smul.addr %s22, 2
          %s153 = smul.addr %s152, 8
          %s154 = scalar_lea.hbm %s0, %s153
          %s156 = sshll.u32 %s154, 4
          %s157 = int_to_ptr.hbm [resolvable:$true] %s156
          %s158 = sshll.u32 %s149, 4
          %s159 = int_to_ptr.vmem [resolvable:$true] %s158
          %161 = dma.hbm_to_vmem [thread:$0]  %s157, 256, %s159, %s146
        $region24: #{tpu_custom_call.1} parent=19 // pred_fallthru
          _
      $region20: #{tpu_custom_call.1} parent=5 // pred_fallthru
        _
      %p162 = scmp.le.s32.totalorder 1, %s15
      %p163 = scmp.lt.s32.totalorder %s15, 3
      %p164 = pnand %p162, %p163
      %p165 = pneg %p164
      // Predicated region
      $region25: #{tpu_custom_call.1} parent=5 // pred_check
        _
      $region26: #{tpu_custom_call.1} parent=5 // pred_check_branch
        %167 = sbr.rel (%p164) target = $region28
      $region27: #{tpu_custom_call.1} parent=5 // pred_region
        %s168 = ssub.s32 %s15, 1
        %s169 = sand.u32 %s40, 1
        %s170 = scalar_lea.sflag [#allocation3], %s169
        %s171 = sand.u32 %s40, 1
        %s172 = smul.addr %s171, 16
        %s173 = scalar_lea.vmem [#allocation2], %s172
        // Predicated region
        $region29: #{tpu_custom_call.1} parent=27 // pred_check
          %p174 = pneg %p53
        $region30: #{tpu_custom_call.1} parent=27 // pred_check_branch
          %176 = sbr.rel (%p174) target = $region32
        $region31: #{tpu_custom_call.1} parent=27 // pred_region
          %178 = dma.done %s170, 256
        $region32: #{tpu_custom_call.1} parent=27 // pred_fallthru
          _
        // Predicated region
        $region33: #{tpu_custom_call.1} parent=27 // pred_check
          %p179 = pneg %p79
        $region34: #{tpu_custom_call.1} parent=27 // pred_check_branch
          %181 = sbr.rel (%p179) target = $region36
        $region35: #{tpu_custom_call.1} parent=27 // pred_region
          %183 = dma.done [#allocation6], 4096
        $region36: #{tpu_custom_call.1} parent=27 // pred_fallthru
          _
        %s184 = sand.u32 %s40, 1
        %s185 = scalar_lea.sflag [#allocation3], %s184
        %s186 = sand.u32 %s40, 1
        %s187 = smul.addr %s186, 16
        %s188 = scalar_lea.vmem [#allocation2], %s187
        %p189 = pneg %p53
        %p190 = pneg %p50
        %p191 = pneg %p79
        %p192 = pneg %p76
        %p193 = pneg %p107
        %p194 = pneg %p104
        %s195 = sand.u32 %s94, 1
        %s196 = scalar_lea.sflag [#allocation4], %s195
        %s197 = sand.u32 %s94, 1
        %s198 = smul.addr %s197, 8
        %s199 = scalar_lea.vmem [#allocation7], %s198
        %v200 = vld [vmem:[%s173] sm:$0xff]
        %v201 = vld [vmem:[%s173 + $0x8] sm:$0xff]
        %v202 = vld [vmem:[#allocation5] sm:$0xff]
        %v203 = vld [vmem:[#allocation5 + $0x8] sm:$0xff]
        %v204 = vld [vmem:[#allocation5 + $0x10] sm:$0xff]
        %v205 = vld [vmem:[#allocation5 + $0x18] sm:$0xff]
        %v206 = vld [vmem:[#allocation5 + $0x20] sm:$0xff]
        %v207 = vld [vmem:[#allocation5 + $0x28] sm:$0xff]
        %v208 = vld [vmem:[#allocation5 + $0x30] sm:$0xff]
        %v209 = vld [vmem:[#allocation5 + $0x38] sm:$0xff]
        %v210 = vld [vmem:[#allocation5 + $0x40] sm:$0xff]
        %v211 = vld [vmem:[#allocation5 + $0x48] sm:$0xff]
        %v212 = vld [vmem:[#allocation5 + $0x50] sm:$0xff]
        %v213 = vld [vmem:[#allocation5 + $0x58] sm:$0xff]
        %v214 = vld [vmem:[#allocation5 + $0x60] sm:$0xff]
        %v215 = vld [vmem:[#allocation5 + $0x68] sm:$0xff]
        %v216 = vld [vmem:[#allocation5 + $0x70] sm:$0xff]
        %v217 = vld [vmem:[#allocation5 + $0x78] sm:$0xff]
        %v218 = vld [vmem:[#allocation5 + $0x80] sm:$0xff]
        %v219 = vld [vmem:[#allocation5 + $0x88] sm:$0xff]
        %v220 = vld [vmem:[#allocation5 + $0x90] sm:$0xff]
        %v221 = vld [vmem:[#allocation5 + $0x98] sm:$0xff]
        %v222 = vld [vmem:[#allocation5 + $0xa0] sm:$0xff]
        %v223 = vld [vmem:[#allocation5 + $0xa8] sm:$0xff]
        %v224 = vld [vmem:[#allocation5 + $0xb0] sm:$0xff]
        %v225 = vld [vmem:[#allocation5 + $0xb8] sm:$0xff]
        %v226 = vld [vmem:[#allocation5 + $0xc0] sm:$0xff]
        %v227 = vld [vmem:[#allocation5 + $0xc8] sm:$0xff]
        %v228 = vld [vmem:[#allocation5 + $0xd0] sm:$0xff]
        %v229 = vld [vmem:[#allocation5 + $0xd8] sm:$0xff]
        %v230 = vld [vmem:[#allocation5 + $0xe0] sm:$0xff]
        %v231 = vld [vmem:[#allocation5 + $0xe8] sm:$0xff]
        %v232 = vld [vmem:[#allocation5 + $0xf0] sm:$0xff]
        %v233 = vld [vmem:[#allocation5 + $0xf8] sm:$0xff]
        %234 = vmatpush.msra.mxu0 %v217
        %235 = vmatpush.msra.mxu0 %v216
        %236 = vmatpush.msra.mxu0 %v215
        %237 = vmatpush.msra.mxu0 %v214
        %238 = vmatpush.msra.mxu0 %v213
        %239 = vmatpush.msra.mxu0 %v212
        %240 = vmatpush.msra.mxu0 %v211
        %241 = vmatpush.msra.mxu0 %v210
        %242 = vmatpush.msra.mxu0 %v209
        %243 = vmatpush.msra.mxu0 %v208
        %244 = vmatpush.msra.mxu0 %v207
        %245 = vmatpush.msra.mxu0 %v206
        %246 = vmatpush.msra.mxu0 %v205
        %247 = vmatpush.msra.mxu0 %v204
        %248 = vmatpush.msra.mxu0 %v203
        %249 = vmatpush.msra.mxu0 %v202
        %250 = vmatmul.f32.gmra.mxu0 %v200
        %v251 = vpop.f32.mrf.mxu0
        %v252 = vadd.f32 0.0, %v251
        %253 = vdwg.mxu0
        %254 = vmatpush.msra.mxu0 %v233
        %255 = vmatpush.msra.mxu0 %v232
        %256 = vmatpush.msra.mxu0 %v231
        %257 = vmatpush.msra.mxu0 %v230
        %258 = vmatpush.msra.mxu0 %v229
        %259 = vmatpush.msra.mxu0 %v228
        %260 = vmatpush.msra.mxu0 %v227
        %261 = vmatpush.msra.mxu0 %v226
        %262 = vmatpush.msra.mxu0 %v225
        %263 = vmatpush.msra.mxu0 %v224
        %264 = vmatpush.msra.mxu0 %v223
        %265 = vmatpush.msra.mxu0 %v222
        %266 = vmatpush.msra.mxu0 %v221
        %267 = vmatpush.msra.mxu0 %v220
        %268 = vmatpush.msra.mxu0 %v219
        %269 = vmatpush.msra.mxu0 %v218
        %270 = vmatmul.f32.gmra.mxu0 %v201
        %v271 = vpop.f32.mrf.mxu0
        %v272 = vadd.f32 %v252, %v271
        %273 = vdwg.mxu0
        %274 = vst [vmem:[%s199] sm:$0xff] %v272
        %s275 = sand.u32 %s94, 1
        %s276 = scalar_lea.sflag [#allocation4], %s275
        %s277 = sand.u32 %s94, 1
        %s278 = smul.addr %s277, 8
        %s279 = scalar_lea.vmem [#allocation7], %s278
        // Predicated region
        $region37: #{tpu_custom_call.1} parent=27 // pred_check
          %p280 = pneg %p104
        $region38: #{tpu_custom_call.1} parent=27 // pred_check_branch
          %282 = sbr.rel (%p280) target = $region40
        $region39: #{tpu_custom_call.1} parent=27 // pred_region
          %284 = vsyncadd %s276, 0
          %s285 = sadd.s32 %s25, %s24
          %s286 = smul.addr %s285, 8
          %s287 = scalar_lea.hbm %s2, %s286
          %s289 = sshll.u32 %s279, 4
          %s290 = int_to_ptr.vmem [resolvable:$true] %s289
          %s291 = sshll.u32 %s287, 4
          %s292 = int_to_ptr.hbm [resolvable:$true] %s291
          %294 = dma.vmem_to_hbm [thread:$0]  %s290, 128, %s292, %s276
        $region40: #{tpu_custom_call.1} parent=27 // pred_fallthru
          _
      $region28: #{tpu_custom_call.1} parent=5 // pred_fallthru
        _
      %p295 = scmp.le.s32.totalorder 2, %s15
      // Predicated region
      $region41: #{tpu_custom_call.1} parent=5 // pred_check
        %p296 = pneg %p295
      $region42: #{tpu_custom_call.1} parent=5 // pred_check_branch
        %298 = sbr.rel (%p296) target = $region44
      $region43: #{tpu_custom_call.1} parent=5 // pred_region
        %s299 = ssub.s32 %s15, 2
        // Predicated region
        $region45: #{tpu_custom_call.1} parent=43 // pred_check
          %p300 = pneg %p110
        $region46: #{tpu_custom_call.1} parent=43 // pred_check_branch
          %302 = sbr.rel (%p300) target = $region48
        $region47: #{tpu_custom_call.1} parent=43 // pred_region
          %s303 = sand.u32 %s95, 1
          %s304 = scalar_lea.sflag [#allocation4], %s303
          %s305 = sand.u32 %s95, 1
          %s306 = smul.addr %s305, 8
          %s307 = scalar_lea.vmem [#allocation7], %s306
          %309 = dma.done %s304, 128
        $region48: #{tpu_custom_call.1} parent=43 // pred_fallthru
          _
      $region44: #{tpu_custom_call.1} parent=5 // pred_fallthru
        _
    $region6: #{tpu_custom_call.1} parent=1 // loop_footer
      %s19 = sadd.s32 1, %s15
    $region7: #{tpu_custom_call.1} parent=1 // loop_footer_branch
      %14 = sbr.rel target = $region3
    $region8: #{tpu_custom_call.1} parent=1 // loop_exit
      _
    %310 = vsyncpa [#allocation3], 1
    %s311 = scalar_lea.sflag [#allocation3], 1
    %312 = vsyncpa %s311, 1
    %313 = vsyncpa [#allocation6], 1
    %314 = vsyncpa [#allocation4], 1
    %s315 = scalar_lea.sflag [#allocation4], 1
    %316 = vsyncpa %s315, 1

</llo_original>
